<compile_context>
chip_gen: v5e
topology: v5e:2x2
jax: 0.10.0
libtpu: 0.0.40
codegen_flags: <defaults>
</compile_context>

<pallas_src>
import jax
import jax.numpy as jnp
from jax.experimental import pallas as pl
from jax.experimental.pallas import tpu as pltpu

BN_EPS = 1e-5  # nn.BatchNorm1d default eps


def _mlp_kernel(x_ref,
                w1_ref, b1_ref,
                w2_ref, b2_ref,
                w34_ref, b34_ref,
                w5_ref, b5_ref,
                o_ref):
    """One batch tile of the fused MLP forward (eval-mode semantics)."""
    x = x_ref[...]  # bf16 [TB, 88]

    # --- self.transform: Linear(88->128) + ReLU (+ Dropout = identity) ---
    h = jnp.dot(x, w1_ref[...], preferred_element_type=jnp.float32) + b1_ref[...]
    h = jnp.maximum(h, 0.0)
    # ---                 Linear(128->88) + ReLU (+ Dropout = identity) ---
    h = jnp.dot(h.astype(jnp.bfloat16), w2_ref[...],
                preferred_element_type=jnp.float32) + b2_ref[...]
    h = jnp.maximum(h, 0.0)

    # --- self.Linear(88->16) fused with self.linear's Linear(16->4)      ---
    # (no nonlinearity between them in the model), then ReLU.
    h = jnp.dot(h, w34_ref[...], preferred_element_type=jnp.float32) + b34_ref[...]
    h = jnp.maximum(h, 0.0)
    # BatchNorm1d(4) eval-mode scale has been folded into w5 (wrapper side).

    # --- self.OutLayer: Linear(4->2) ---
    z = jnp.dot(h, w5_ref[...], preferred_element_type=jnp.float32) + b5_ref[...]

    # --- self.softmax: LogSoftmax over dim=1 (numerically stable) ---
    m = jnp.max(z, axis=-1, keepdims=True)
    lse = jnp.log(jnp.sum(jnp.exp(z - m), axis=-1, keepdims=True)) + m
    o_ref[...] = (z - lse).astype(o_ref.dtype)


def _fold_params(params):
    """Exact algebraic folds: merge the 88->16 and 16->4 linears; fold the
    eval-mode BatchNorm scale into the final linear; cast the two big
    matmuls' weights to bf16 (accumulation stays f32 in the kernel)."""
    (w1, b1), (w2, b2), (w3, b3), (w4, b4), (w5, b5) = params
    w34 = w3 @ w4                  # (88, 4)
    b34 = b3 @ w4 + b4             # (4,)
    # BN eval with fresh stats: h -> h * rsqrt(1 + eps); (s*h) @ w5 == h @ (s*w5)
    s = 1.0 / jnp.sqrt(jnp.float32(1.0 + BN_EPS))
    w5s = w5 * s
    # TODO(synk): if trained BN running stats / affine params exist, fold
    # (gamma, beta, running_mean, running_var) into w5s/b5 here instead.
    return [
        (w1.astype(jnp.bfloat16), b1),
        (w2.astype(jnp.bfloat16), b2),
        (w34, b34),
        (w5s, b5),
    ]


def mlp_forward(x, params, *, block_b=1024):
    """x: [B, 88] float32; params: 5 (W[in,out], b[out]) pairs."""
    B, F = x.shape
    folded = _fold_params(params)
    n_out = folded[-1][0].shape[1]

    # Batch tile: biggest that fits comfortably in VMEM, rounded to a
    # sublane/packing-friendly multiple of 16; pad B so the grid divides evenly.
    tb = min(block_b, B)
    tb = max(16, ((tb + 15) // 16) * 16)
    Bp = ((B + tb - 1) // tb) * tb
    if Bp != B:
        x = jnp.pad(x, ((0, Bp - B), (0, 0)))
    x = x.astype(jnp.bfloat16)  # halves x DMA bytes; bf16 MXU operand

    args = [x]
    in_specs = [pl.BlockSpec((tb, F), lambda i: (i, 0))]
    for (w, b) in folded:
        args.append(w)
        args.append(b.reshape(1, -1))
        # Constant index_map -> weights/biases stay VMEM-resident across tiles.
        in_specs.append(pl.BlockSpec(w.shape, lambda i: (0, 0)))
        in_specs.append(pl.BlockSpec((1, b.shape[0]), lambda i: (0, 0)))
    out_specs = pl.BlockSpec((tb, n_out), lambda i: (i, 0))

    flops = 2 * Bp * sum(w.shape[0] * w.shape[1] for (w, _) in folded)
    bytes_accessed = int(
        x.size * x.dtype.itemsize
        + sum(w.size * w.dtype.itemsize + b.size * b.dtype.itemsize
              for (w, b) in folded)
        + Bp * n_out * 4)

    out = pl.pallas_call(
        _mlp_kernel,
        out_shape=jax.ShapeDtypeStruct((Bp, n_out), jnp.float32),
        grid=(Bp // tb,),
        in_specs=in_specs,
        out_specs=out_specs,
        compiler_params=pltpu.CompilerParams(
            dimension_semantics=("parallel",)),  # batch tiles across TCs on v7x
        cost_estimate=pl.CostEstimate(
            flops=flops, transcendentals=3 * Bp, bytes_accessed=bytes_accessed),
    )(*args)
    return out[:B]


def init_params(key, net1=(88, 128, 88), net2=(16, 4, 2)):
    """Deterministic parameter init (uniform, PyTorch-Linear-style bounds)."""
    dims = []
    for i in range(len(net1) - 1):                # self.transform
        dims.append((net1[i], net1[i + 1]))
    dims.append((net1[-1], net2[0]))              # self.Linear
    for i in range(len(net2) - 2):                # self.linear
        dims.append((net2[i], net2[i + 1]))
    dims.append((net2[-2], net2[-1]))             # self.OutLayer

    params = []
    for (fan_in, fan_out) in dims:
        key, kw, kb = jax.random.split(key, 3)
        bound = 1.0 / (fan_in ** 0.5)
        w = jax.random.uniform(kw, (fan_in, fan_out), jnp.float32, -bound, bound)
        b = jax.random.uniform(kb, (fan_out,), jnp.float32, -bound, bound)
        params.append((w, b))
    return params


def reference_forward(x, params, *, match_kernel_precision=False):
    """Pure-JAX reference. match_kernel_precision=True mimics the kernel's
    bf16 operands (f32 accumulate) for the two big matmuls."""
    (w1, b1), (w2, b2), (w3, b3), (w4, b4), (w5, b5) = params
    if match_kernel_precision:
        h = jnp.dot(x.astype(jnp.bfloat16), w1.astype(jnp.bfloat16),
                    preferred_element_type=jnp.float32) + b1
        h = jnp.maximum(h, 0.0)
        h = jnp.dot(h.astype(jnp.bfloat16), w2.astype(jnp.bfloat16),
                    preferred_element_type=jnp.float32) + b2
        h = jnp.maximum(h, 0.0)
    else:
        h = jnp.maximum(x @ w1 + b1, 0.0)
        h = jnp.maximum(h @ w2 + b2, 0.0)
    h = h @ w3 + b3                                  # self.Linear
    h = jnp.maximum(h @ w4 + b4, 0.0)                # self.linear: Linear + ReLU
    h = h / jnp.sqrt(1.0 + BN_EPS)                   # BatchNorm1d (eval, fresh stats)
    z = h @ w5 + b5                                  # OutLayer
    return jax.nn.log_softmax(z, axis=-1)


if __name__ == "__main__":
    key = jax.random.PRNGKey(0)
    key, kx = jax.random.split(key)

    B = 8
    x = jax.random.normal(kx, (B, 88), dtype=jnp.float32)
    params = init_params(key)

    out = jax.block_until_ready(mlp_forward(x, params))
    assert out.shape == (B, 2), out.shape

    # Tight check against a precision-matched reference (same bf16 operands).
    ref_match = reference_forward(x, params, match_kernel_precision=True)
    err_m = float(jnp.max(jnp.abs(out - ref_match)))
    assert err_m < 2e-3, f"matched-precision max abs err {err_m}"

    # Looser sanity check against the exact f32 eval-mode PyTorch semantics.
    ref_exact = reference_forward(x, params, match_kernel_precision=False)
    err_e = float(jnp.max(jnp.abs(out - ref_exact)))
    assert err_e < 1e-1, f"f32-reference max abs err {err_e}"

    print("KERNEL_OK")
</pallas_src>

<mosaic_0001>
module attributes {stable_mosaic.version = 11 : i64} {
  func.func @_mlp_kernel(%arg0: i32, %arg1: memref<16x88xbf16, #tpu.memory_space<vmem>>, %arg2: memref<88x128xbf16, #tpu.memory_space<vmem>>, %arg3: memref<1x128xf32, #tpu.memory_space<vmem>>, %arg4: memref<128x88xbf16, #tpu.memory_space<vmem>>, %arg5: memref<1x88xf32, #tpu.memory_space<vmem>>, %arg6: memref<88x4xf32, #tpu.memory_space<vmem>>, %arg7: memref<1x4xf32, #tpu.memory_space<vmem>>, %arg8: memref<4x2xf32, #tpu.memory_space<vmem>>, %arg9: memref<1x2xf32, #tpu.memory_space<vmem>>, %arg10: memref<16x2xf32, #tpu.memory_space<vmem>>) attributes {dimension_semantics = [#tpu.dimension_semantics<parallel>], iteration_bounds = array<i64: 1>, scalar_prefetch = 0 : i64, scratch_operands = 0 : i64, tpu.core_type = #tpu.core_type<tc>, window_params = [{transform_indices = @transform_0, window_bounds = array<i64: 16, 88>}, {pipeline_mode = #tpu.pipeline_mode<synchronous>, transform_indices = @transform_1, window_bounds = array<i64: 88, 128>}, {pipeline_mode = #tpu.pipeline_mode<synchronous>, transform_indices = @transform_2, window_bounds = array<i64: 1, 128>}, {pipeline_mode = #tpu.pipeline_mode<synchronous>, transform_indices = @transform_3, window_bounds = array<i64: 128, 88>}, {pipeline_mode = #tpu.pipeline_mode<synchronous>, transform_indices = @transform_4, window_bounds = array<i64: 1, 88>}, {pipeline_mode = #tpu.pipeline_mode<synchronous>, transform_indices = @transform_5, window_bounds = array<i64: 88, 4>}, {pipeline_mode = #tpu.pipeline_mode<synchronous>, transform_indices = @transform_6, window_bounds = array<i64: 1, 4>}, {pipeline_mode = #tpu.pipeline_mode<synchronous>, transform_indices = @transform_7, window_bounds = array<i64: 4, 2>}, {pipeline_mode = #tpu.pipeline_mode<synchronous>, transform_indices = @transform_8, window_bounds = array<i64: 1, 2>}, {transform_indices = @transform_9, window_bounds = array<i64: 16, 2>}]} {
    %c0 = arith.constant 0 : index
    %c0_0 = arith.constant 0 : index
    %0 = vector.load %arg1[%c0, %c0_0] : memref<16x88xbf16, #tpu.memory_space<vmem>>, vector<16x88xbf16>
    %c0_1 = arith.constant 0 : index
    %c0_2 = arith.constant 0 : index
    %1 = vector.load %arg2[%c0_1, %c0_2] : memref<88x128xbf16, #tpu.memory_space<vmem>>, vector<88x128xbf16>
    %cst = arith.constant dense<0.000000e+00> : vector<16x128xf32>
    %2 = tpu.matmul %0, %1, %cst {dimension_numbers = #tpu.dot_dimension_numbers<[1], [0], [0], [1], [0, 0, 1, 1], [], []>} : vector<16x88xbf16>, vector<88x128xbf16>, vector<16x128xf32> -> vector<16x128xf32>
    %c0_3 = arith.constant 0 : index
    %c0_4 = arith.constant 0 : index
    %3 = vector.load %arg3[%c0_3, %c0_4] : memref<1x128xf32, #tpu.memory_space<vmem>>, vector<1x128xf32>
    %4 = vector.broadcast %3 : vector<1x128xf32> to vector<16x128xf32>
    %5 = arith.addf %2, %4 : vector<16x128xf32>
    %cst_5 = arith.constant 0.000000e+00 : f32
    %6 = vector.broadcast %cst_5 : f32 to vector<16x128xf32>
    %7 = arith.maximumf %5, %6 : vector<16x128xf32>
    %8 = arith.truncf %7 : vector<16x128xf32> to vector<16x128xbf16>
    %c0_6 = arith.constant 0 : index
    %c0_7 = arith.constant 0 : index
    %9 = vector.load %arg4[%c0_6, %c0_7] : memref<128x88xbf16, #tpu.memory_space<vmem>>, vector<128x88xbf16>
    %cst_8 = arith.constant dense<0.000000e+00> : vector<16x88xf32>
    %10 = tpu.matmul %8, %9, %cst_8 {dimension_numbers = #tpu.dot_dimension_numbers<[1], [0], [0], [1], [0, 0, 1, 1], [], []>} : vector<16x128xbf16>, vector<128x88xbf16>, vector<16x88xf32> -> vector<16x88xf32>
    %c0_9 = arith.constant 0 : index
    %c0_10 = arith.constant 0 : index
    %11 = vector.load %arg5[%c0_9, %c0_10] : memref<1x88xf32, #tpu.memory_space<vmem>>, vector<1x88xf32>
    %12 = vector.broadcast %11 : vector<1x88xf32> to vector<16x88xf32>
    %13 = arith.addf %10, %12 : vector<16x88xf32>
    %cst_11 = arith.constant 0.000000e+00 : f32
    %14 = vector.broadcast %cst_11 : f32 to vector<16x88xf32>
    %15 = arith.maximumf %13, %14 : vector<16x88xf32>
    %c0_12 = arith.constant 0 : index
    %c0_13 = arith.constant 0 : index
    %16 = vector.load %arg6[%c0_12, %c0_13] : memref<88x4xf32, #tpu.memory_space<vmem>>, vector<88x4xf32>
    %cst_14 = arith.constant dense<0.000000e+00> : vector<16x4xf32>
    %17 = tpu.matmul %15, %16, %cst_14 {dimension_numbers = #tpu.dot_dimension_numbers<[1], [0], [0], [1], [0, 0, 1, 1], [], []>} : vector<16x88xf32>, vector<88x4xf32>, vector<16x4xf32> -> vector<16x4xf32>
    %c0_15 = arith.constant 0 : index
    %c0_16 = arith.constant 0 : index
    %18 = vector.load %arg7[%c0_15, %c0_16] : memref<1x4xf32, #tpu.memory_space<vmem>>, vector<1x4xf32>
    %19 = vector.broadcast %18 : vector<1x4xf32> to vector<16x4xf32>
    %20 = arith.addf %17, %19 : vector<16x4xf32>
    %cst_17 = arith.constant 0.000000e+00 : f32
    %21 = vector.broadcast %cst_17 : f32 to vector<16x4xf32>
    %22 = arith.maximumf %20, %21 : vector<16x4xf32>
    %c0_18 = arith.constant 0 : index
    %c0_19 = arith.constant 0 : index
    %23 = vector.load %arg8[%c0_18, %c0_19] : memref<4x2xf32, #tpu.memory_space<vmem>>, vector<4x2xf32>
    %cst_20 = arith.constant dense<0.000000e+00> : vector<16x2xf32>
    %24 = tpu.matmul %22, %23, %cst_20 {dimension_numbers = #tpu.dot_dimension_numbers<[1], [0], [0], [1], [0, 0, 1, 1], [], []>} : vector<16x4xf32>, vector<4x2xf32>, vector<16x2xf32> -> vector<16x2xf32>
    %c0_21 = arith.constant 0 : index
    %c0_22 = arith.constant 0 : index
    %25 = vector.load %arg9[%c0_21, %c0_22] : memref<1x2xf32, #tpu.memory_space<vmem>>, vector<1x2xf32>
    %26 = vector.broadcast %25 : vector<1x2xf32> to vector<16x2xf32>
    %27 = arith.addf %24, %26 : vector<16x2xf32>
    %cst_23 = arith.constant dense<0xFF800000> : vector<16xf32>
    %28 = vector.multi_reduction <maximumf>, %27, %cst_23 [1] : vector<16x2xf32> to vector<16xf32>
    %29 = vector.shape_cast %28 : vector<16xf32> to vector<16x1xf32>
    %30 = vector.broadcast %29 : vector<16x1xf32> to vector<16x2xf32>
    %31 = arith.subf %27, %30 : vector<16x2xf32>
    %32 = math.exp %31 : vector<16x2xf32>
    %cst_24 = arith.constant dense<0.000000e+00> : vector<16xf32>
    %33 = vector.multi_reduction <add>, %32, %cst_24 [1] : vector<16x2xf32> to vector<16xf32>
    %34 = vector.shape_cast %33 : vector<16xf32> to vector<16x1xf32>
    %35 = math.log %34 : vector<16x1xf32>
    %36 = arith.addf %35, %29 : vector<16x1xf32>
    %37 = vector.broadcast %36 : vector<16x1xf32> to vector<16x2xf32>
    %38 = arith.subf %27, %37 : vector<16x2xf32>
    %c0_25 = arith.constant 0 : index
    %c0_26 = arith.constant 0 : index
    %39 = vector.load %arg10[%c0_25, %c0_26] : memref<16x2xf32, #tpu.memory_space<vmem>>, vector<16x2xf32>
    tpu.vector_store %arg10[%c0_25, %c0_26], %38 {strides = array<i32>} : memref<16x2xf32, #tpu.memory_space<vmem>>, vector<16x2xf32>,
    return
  }
  func.func @transform_0(%arg0: i32) -> (i32, i32) {
    %c0_i32 = arith.constant 0 : i32
    %c0_i32_0 = arith.constant 0 : i32
    return %arg0, %c0_i32 : i32, i32
  }
  func.func @transform_1(%arg0: i32) -> (i32, i32) {
    %c0_i32 = arith.constant 0 : i32
    %c0_i32_0 = arith.constant 0 : i32
    %c0_i32_1 = arith.constant 0 : i32
    return %c0_i32, %c0_i32_0 : i32, i32
  }
  func.func @transform_2(%arg0: i32) -> (i32, i32) {
    %c0_i32 = arith.constant 0 : i32
    %c0_i32_0 = arith.constant 0 : i32
    %c0_i32_1 = arith.constant 0 : i32
    return %c0_i32, %c0_i32_0 : i32, i32
  }
  func.func @transform_3(%arg0: i32) -> (i32, i32) {
    %c0_i32 = arith.constant 0 : i32
    %c0_i32_0 = arith.constant 0 : i32
    %c0_i32_1 = arith.constant 0 : i32
    return %c0_i32, %c0_i32_0 : i32, i32
  }
  func.func @transform_4(%arg0: i32) -> (i32, i32) {
    %c0_i32 = arith.constant 0 : i32
    %c0_i32_0 = arith.constant 0 : i32
    %c0_i32_1 = arith.constant 0 : i32
    return %c0_i32, %c0_i32_0 : i32, i32
  }
  func.func @transform_5(%arg0: i32) -> (i32, i32) {
    %c0_i32 = arith.constant 0 : i32
    %c0_i32_0 = arith.constant 0 : i32
    %c0_i32_1 = arith.constant 0 : i32
    return %c0_i32, %c0_i32_0 : i32, i32
  }
  func.func @transform_6(%arg0: i32) -> (i32, i32) {
    %c0_i32 = arith.constant 0 : i32
    %c0_i32_0 = arith.constant 0 : i32
    %c0_i32_1 = arith.constant 0 : i32
    return %c0_i32, %c0_i32_0 : i32, i32
  }
  func.func @transform_7(%arg0: i32) -> (i32, i32) {
    %c0_i32 = arith.constant 0 : i32
    %c0_i32_0 = arith.constant 0 : i32
    %c0_i32_1 = arith.constant 0 : i32
    return %c0_i32, %c0_i32_0 : i32, i32
  }
  func.func @transform_8(%arg0: i32) -> (i32, i32) {
    %c0_i32 = arith.constant 0 : i32
    %c0_i32_0 = arith.constant 0 : i32
    %c0_i32_1 = arith.constant 0 : i32
    return %c0_i32, %c0_i32_0 : i32, i32
  }
  func.func @transform_9(%arg0: i32) -> (i32, i32) {
    %c0_i32 = arith.constant 0 : i32
    %c0_i32_0 = arith.constant 0 : i32
    return %arg0, %c0_i32 : i32, i32
  }
}

</mosaic_0001>

<llo_original>
// kernel: tpu_custom_call.1
$region0: #{tpu_custom_call.1}
  #allocation0 [shape = 'u32[]', space=smem, size = 0x4, offset = 0x4, fixed_abs, tag = 'smem constant byte address 0x4 - core index']
  #allocation1 [shape = 'u32[72,128]{1,0:T(1,128)}', space=vmem, size = 0x9000, scoped, tag = 'internal scratch']
  %s0 = inlined_call_operand.vmem [shape: bf16[16,88], index: 0, kind: input, shape index: {}]
  %s1 = inlined_call_operand.vmem [shape: bf16[88,128], index: 1, kind: input, shape index: {}]
  %s2 = inlined_call_operand.vmem [shape: f32[1,128], index: 2, kind: input, shape index: {}]
  %s3 = inlined_call_operand.vmem [shape: bf16[128,88], index: 3, kind: input, shape index: {}]
  %s4 = inlined_call_operand.vmem [shape: f32[1,88], index: 4, kind: input, shape index: {}]
  %s5 = inlined_call_operand.vmem [shape: f32[88,4], index: 5, kind: input, shape index: {}]
  %s6 = inlined_call_operand.vmem [shape: f32[1,4], index: 6, kind: input, shape index: {}]
  %s7 = inlined_call_operand.vmem [shape: f32[4,2], index: 7, kind: input, shape index: {}]
  %s8 = inlined_call_operand.vmem [shape: f32[1,2], index: 8, kind: input, shape index: {}]
  %s9 = inlined_call_operand.vmem [shape: f32[16,2], index: 9, kind: output, shape index: {}]
  %s10 = sld [smem:[#allocation0]]
  $region46: #{tpu_custom_call.1} parent=0
    _
  %s12 = ssub.s32 1, %s10
  %s13 = scalar_select 0, %s12, %s10
  // Predicated region
  $region2: #{tpu_custom_call.1} parent=0 // pred_check
    _
  $region3: #{tpu_custom_call.1} parent=0 // pred_check_branch
    %15 = sbr.rel (0) target = $region5
  $region4: #{tpu_custom_call.1} parent=0 // pred_region
    _
  $region5: #{tpu_custom_call.1} parent=0 // pred_fallthru
    _
  // Predicated region
  $region6: #{tpu_custom_call.1} parent=0 // pred_check
    _
  $region7: #{tpu_custom_call.1} parent=0 // pred_check_branch
    %17 = sbr.rel (0) target = $region9
  $region8: #{tpu_custom_call.1} parent=0 // pred_region
    _
  $region9: #{tpu_custom_call.1} parent=0 // pred_fallthru
    _
  // Predicated region
  $region10: #{tpu_custom_call.1} parent=0 // pred_check
    _
  $region11: #{tpu_custom_call.1} parent=0 // pred_check_branch
    %19 = sbr.rel (0) target = $region13
  $region12: #{tpu_custom_call.1} parent=0 // pred_region
    _
  $region13: #{tpu_custom_call.1} parent=0 // pred_fallthru
    _
  // Predicated region
  $region14: #{tpu_custom_call.1} parent=0 // pred_check
    _
  $region15: #{tpu_custom_call.1} parent=0 // pred_check_branch
    %21 = sbr.rel (0) target = $region17
  $region16: #{tpu_custom_call.1} parent=0 // pred_region
    _
  $region17: #{tpu_custom_call.1} parent=0 // pred_fallthru
    _
  // Predicated region
  $region18: #{tpu_custom_call.1} parent=0 // pred_check
    _
  $region19: #{tpu_custom_call.1} parent=0 // pred_check_branch
    %23 = sbr.rel (0) target = $region21
  $region20: #{tpu_custom_call.1} parent=0 // pred_region
    _
  $region21: #{tpu_custom_call.1} parent=0 // pred_fallthru
    _
  // Predicated region
  $region22: #{tpu_custom_call.1} parent=0 // pred_check
    _
  $region23: #{tpu_custom_call.1} parent=0 // pred_check_branch
    %25 = sbr.rel (0) target = $region25
  $region24: #{tpu_custom_call.1} parent=0 // pred_region
    _
  $region25: #{tpu_custom_call.1} parent=0 // pred_fallthru
    _
  // Predicated region
  $region26: #{tpu_custom_call.1} parent=0 // pred_check
    _
  $region27: #{tpu_custom_call.1} parent=0 // pred_check_branch
    %27 = sbr.rel (0) target = $region29
  $region28: #{tpu_custom_call.1} parent=0 // pred_region
    _
  $region29: #{tpu_custom_call.1} parent=0 // pred_fallthru
    _
  // Predicated region
  $region30: #{tpu_custom_call.1} parent=0 // pred_check
    _
  $region31: #{tpu_custom_call.1} parent=0 // pred_check_branch
    %29 = sbr.rel (0) target = $region33
  $region32: #{tpu_custom_call.1} parent=0 // pred_region
    _
  $region33: #{tpu_custom_call.1} parent=0 // pred_fallthru
    _
  // Predicated region
  $region34: #{tpu_custom_call.1} parent=0 // pred_check
    _
  $region35: #{tpu_custom_call.1} parent=0 // pred_check_branch
    %31 = sbr.rel (0) target = $region37
  $region36: #{tpu_custom_call.1} parent=0 // pred_region
    _
  $region37: #{tpu_custom_call.1} parent=0 // pred_fallthru
    _
  %v33 = vld [vmem:[%s0] sm:$0xf]
  %v34 = vld [vmem:[%s0 + $0x4] sm:$0xf]
  %v35 = vld [vmem:[%s1] sm:$0xf]
  %v36 = vld [vmem:[%s1 + $0x4] sm:$0xf]
  %v37 = vld [vmem:[%s1 + $0x8] sm:$0xf]
  %v38 = vld [vmem:[%s1 + $0xc] sm:$0xf]
  %v39 = vld [vmem:[%s1 + $0x10] sm:$0xf]
  %v40 = vld [vmem:[%s1 + $0x14] sm:$0xf]
  %v41 = vld [vmem:[%s1 + $0x18] sm:$0xf]
  %v42 = vld [vmem:[%s1 + $0x1c] sm:$0xf]
  %v43 = vld [vmem:[%s1 + $0x20] sm:$0xf]
  %v44 = vld [vmem:[%s1 + $0x24] sm:$0xf]
  %v45 = vld [vmem:[%s1 + $0x28] sm:$0xf]
  %v46 = vld [vmem:[%s2] sm:$0x1]
  %v48 = vperm.slane %v46, 0
  %v52 = vunpack.c.l.b16 %v33
  %v53 = vunpack.c.l.b16 %v34
  %v54 = vpack.c.b16 %v53, %v52
  %v66 = vunpack.c.l.b16 %v35
  %v67 = vunpack.c.l.b16 %v36
  %v68 = vunpack.c.l.b16 %v37
  %v69 = vunpack.c.l.b16 %v38
  %v70 = vunpack.c.l.b16 %v39
  %v71 = vunpack.c.l.b16 %v40
  %v72 = vunpack.c.l.b16 %v41
  %v73 = vunpack.c.l.b16 %v42
  %v74 = vunpack.c.l.b16 %v43
  %v75 = vunpack.c.l.b16 %v44
  %v76 = vunpack.c.l.b16 %v45
  %v77 = vpack.c.b16 %v67, %v66
  %v78 = vpack.c.b16 %v69, %v68
  %v79 = vpack.c.b16 %v71, %v70
  %v80 = vpack.c.b16 %v73, %v72
  %v81 = vpack.c.b16 %v75, %v74
  %v82 = vpack.c.b16 %v76, %v76
  %vm88 = vcmask 719872
  %v90 = vsel %vm88, %v54, 0
  %vm92 = vcmask 1043456
  %v94 = vsel %vm92, %v82, 0
  %96 = vmatpush.bf16.msra.mxu0 0
  %97 = vmatpush.bf16.msra.mxu0 0
  %98 = vmatpush.bf16.msra.mxu0 %v94
  %99 = vmatpush.bf16.msra.mxu0 %v81
  %100 = vmatpush.bf16.msra.mxu0 %v80
  %101 = vmatpush.bf16.msra.mxu0 %v79
  %102 = vmatpush.bf16.msra.mxu0 %v78
  %103 = vmatpush.bf16.msra.mxu0 %v77
  %104 = vmatmul.bf16.gmra.mxu0 %v90
  %v105 = vpop.f32.mrf.mxu0
  %v106 = vadd.f32 %v48, %v105
  %v107 = vpop.f32.mrf.mxu0
  %v108 = vadd.f32 %v48, %v107
  %109 = vdwg.mxu0
  %v110 = vmax.f32 %v106, 0.0
  %v111 = vmax.f32 %v108, 0.0
  %v112 = vpack.c.bf16 %v111, %v110
  %v113 = vld [vmem:[%s3] sm:$0xf]
  %v114 = vld [vmem:[%s3 + $0x4] sm:$0xf]
  %v115 = vld [vmem:[%s3 + $0x8] sm:$0xf]
  %v116 = vld [vmem:[%s3 + $0xc] sm:$0xf]
  %v117 = vld [vmem:[%s3 + $0x10] sm:$0xf]
  %v118 = vld [vmem:[%s3 + $0x14] sm:$0xf]
  %v119 = vld [vmem:[%s3 + $0x18] sm:$0xf]
  %v120 = vld [vmem:[%s3 + $0x1c] sm:$0xf]
  %v121 = vld [vmem:[%s3 + $0x20] sm:$0xf]
  %v122 = vld [vmem:[%s3 + $0x24] sm:$0xf]
  %v123 = vld [vmem:[%s3 + $0x28] sm:$0xf]
  %v124 = vld [vmem:[%s3 + $0x2c] sm:$0xf]
  %v125 = vld [vmem:[%s3 + $0x30] sm:$0xf]
  %v126 = vld [vmem:[%s3 + $0x34] sm:$0xf]
  %v127 = vld [vmem:[%s3 + $0x38] sm:$0xf]
  %v128 = vld [vmem:[%s3 + $0x3c] sm:$0xf]
  %v129 = vld [vmem:[%s4] sm:$0x1]
  %v131 = vperm.slane %v129, 0
  %v149 = vunpack.c.l.b16 %v113
  %v150 = vunpack.c.l.b16 %v114
  %v151 = vunpack.c.l.b16 %v115
  %v152 = vunpack.c.l.b16 %v116
  %v153 = vunpack.c.l.b16 %v117
  %v154 = vunpack.c.l.b16 %v118
  %v155 = vunpack.c.l.b16 %v119
  %v156 = vunpack.c.l.b16 %v120
  %v157 = vunpack.c.l.b16 %v121
  %v158 = vunpack.c.l.b16 %v122
  %v159 = vunpack.c.l.b16 %v123
  %v160 = vunpack.c.l.b16 %v124
  %v161 = vunpack.c.l.b16 %v125
  %v162 = vunpack.c.l.b16 %v126
  %v163 = vunpack.c.l.b16 %v127
  %v164 = vunpack.c.l.b16 %v128
  %v165 = vpack.c.b16 %v150, %v149
  %v166 = vpack.c.b16 %v152, %v151
  %v167 = vpack.c.b16 %v154, %v153
  %v168 = vpack.c.b16 %v156, %v155
  %v169 = vpack.c.b16 %v158, %v157
  %v170 = vpack.c.b16 %v160, %v159
  %v171 = vpack.c.b16 %v162, %v161
  %v172 = vpack.c.b16 %v164, %v163
  %181 = vmatpush.bf16.msra.mxu0 %v172
  %182 = vmatpush.bf16.msra.mxu0 %v171
  %183 = vmatpush.bf16.msra.mxu0 %v170
  %184 = vmatpush.bf16.msra.mxu0 %v169
  %185 = vmatpush.bf16.msra.mxu0 %v168
  %186 = vmatpush.bf16.msra.mxu0 %v167
  %187 = vmatpush.bf16.msra.mxu0 %v166
  %188 = vmatpush.bf16.msra.mxu0 %v165
  %189 = vmatmul.bf16.gmra.mxu0 %v112
  %v190 = vpop.f32.mrf.mxu0
  %v191 = vadd.f32 %v131, %v190
  %v192 = vpop.f32.mrf.mxu0
  %v193 = vadd.f32 %v131, %v192
  %194 = vdwg.mxu0
  %v195 = vmax.f32 %v191, 0.0
  %v196 = vmax.f32 %v193, 0.0
  %v197 = vld [vmem:[%s5] sm:$0xff]
  %v198 = vld [vmem:[%s5 + $0x8] sm:$0xff]
  %v199 = vld [vmem:[%s5 + $0x10] sm:$0xff]
  %v200 = vld [vmem:[%s5 + $0x18] sm:$0xff]
  %v201 = vld [vmem:[%s5 + $0x20] sm:$0xff]
  %v202 = vld [vmem:[%s5 + $0x28] sm:$0xff]
  %v203 = vld [vmem:[%s5 + $0x30] sm:$0xff]
  %v204 = vld [vmem:[%s5 + $0x38] sm:$0xff]
  %v205 = vld [vmem:[%s5 + $0x40] sm:$0xff]
  %v206 = vld [vmem:[%s5 + $0x48] sm:$0xff]
  %v207 = vld [vmem:[%s5 + $0x50] sm:$0xff]
  %v208 = vld [vmem:[%s6] sm:$0x1]
  %v210 = vperm.slane %v208, 0
  %v213 = vsel %vm88, %v195, 0
  %v216 = vsel %vm88, %v196, 0
  %218 = vmatpush.msra.mxu0 0.0
  %219 = vmatpush.msra.mxu0 0.0
  %220 = vmatpush.msra.mxu0 0.0
  %221 = vmatpush.msra.mxu0 0.0
  %222 = vmatpush.msra.mxu0 0.0
  %223 = vmatpush.msra.mxu0 %v207
  %224 = vmatpush.msra.mxu0 %v206
  %225 = vmatpush.msra.mxu0 %v205
  %226 = vmatpush.msra.mxu0 %v204
  %227 = vmatpush.msra.mxu0 %v203
  %228 = vmatpush.msra.mxu0 %v202
  %229 = vmatpush.msra.mxu0 %v201
  %230 = vmatpush.msra.mxu0 %v200
  %231 = vmatpush.msra.mxu0 %v199
  %232 = vmatpush.msra.mxu0 %v198
  %233 = vmatpush.msra.mxu0 %v197
  %234 = vmatmul.f32.gmra.mxu0 %v213
  %v235 = vpop.f32.mrf.mxu0
  %v236 = vadd.f32 %v210, %v235
  %237 = vmatmul.f32.gmra.mxu0 %v216
  %v238 = vpop.f32.mrf.mxu0
  %v239 = vadd.f32 %v210, %v238
  %240 = vdwg.mxu0
  %v241 = vmax.f32 %v236, 0.0
  %v242 = vmax.f32 %v239, 0.0
  %v243 = vld [vmem:[%s7] sm:$0xf]
  %v244 = vld [vmem:[%s8] sm:$0x1]
  %v246 = vperm.slane %v244, 0
  %vm248 = vcmask 31744
  %v250 = vsel %vm248, %v241, 0
  %v253 = vsel %vm248, %v242, 0
  %v256 = vsel %vm92, %v243, 0
  %258 = vmatpush.msra.mxu0 0.0
  %259 = vmatpush.msra.mxu0 0.0
  %260 = vmatpush.msra.mxu0 0.0
  %261 = vmatpush.msra.mxu0 0.0
  %262 = vmatpush.msra.mxu0 0.0
  %263 = vmatpush.msra.mxu0 0.0
  %264 = vmatpush.msra.mxu0 0.0
  %265 = vmatpush.msra.mxu0 0.0
  %266 = vmatpush.msra.mxu0 0.0
  %267 = vmatpush.msra.mxu0 0.0
  %268 = vmatpush.msra.mxu0 0.0
  %269 = vmatpush.msra.mxu0 0.0
  %270 = vmatpush.msra.mxu0 0.0
  %271 = vmatpush.msra.mxu0 0.0
  %272 = vmatpush.msra.mxu0 0.0
  %273 = vmatpush.msra.mxu0 %v256
  %274 = vmatmul.f32.gmra.mxu0 %v250
  %v275 = vpop.f32.mrf.mxu0
  %v276 = vadd.f32 %v246, %v275
  %277 = vmatmul.f32.gmra.mxu0 %v253
  %v278 = vpop.f32.mrf.mxu0
  %v279 = vadd.f32 %v246, %v278
  %280 = vdwg.mxu0
  %vm281 = vcmask 15360
  %v282 = vsel %vm281, %v276, -inf
  %283 = vmax.xlane.f32.xlu0 %v282
  %v284 = vpop.xlane.xlu0 %283
  %v285 = vsel %vm281, %v279, -inf
  %286 = vmax.xlane.f32.xlu0 %v285
  %v287 = vpop.xlane.xlu0 %286
  %v288 = vsub.f32 %v276, %v284
  %v289 = vsub.f32 %v279, %v287
  %v290 = vmul.f32 %v288, 1.442695
  %v291 = vpow.pop %v290
  %v292 = vmul.f32 %v289, 1.442695
  %v293 = vpow.pop %v292
  %v294 = vsel %vm281, %v291, 0.0
  %295 = vadd.xlane.f32.xlu0 %v294
  %v296 = vpop.xlane.xlu0 %295
  %v297 = vsel %vm281, %v293, 0.0
  %298 = vadd.xlane.f32.xlu0 %v297
  %v299 = vpop.xlane.xlu0 %298
  %v300 = vlog2.pop %v296
  %v301 = vmul.f32 %v300, 0.6931472
  %v302 = vlog2.pop %v299
  %v303 = vmul.f32 %v302, 0.6931472
  %v304 = vadd.f32 %v301, %v284
  %v305 = vadd.f32 %v303, %v287
  %v306 = vsub.f32 %v276, %v304
  %v307 = vsub.f32 %v279, %v305
  %308 = vst.msk [vmem:[%s9] sm:$0xff] %vm281, %v306
  %309 = vst.msk [vmem:[%s9 + $0x8] sm:$0xff] %vm281, %v307
  // Predicated region
  $region38: #{tpu_custom_call.1} parent=0 // pred_check
    _
  $region39: #{tpu_custom_call.1} parent=0 // pred_check_branch
    %311 = sbr.rel (0) target = $region41
  $region40: #{tpu_custom_call.1} parent=0 // pred_region
    _
  $region41: #{tpu_custom_call.1} parent=0 // pred_fallthru
    _
  // Predicated region
  $region42: #{tpu_custom_call.1} parent=0 // pred_check
    _
  $region43: #{tpu_custom_call.1} parent=0 // pred_check_branch
    %313 = sbr.rel (0) target = $region45
  $region44: #{tpu_custom_call.1} parent=0 // pred_region
    _
  $region45: #{tpu_custom_call.1} parent=0 // pred_fallthru
    _

</llo_original>
